<compile_context>
chip_gen: v7x
topology: tpu7x:2x2x1
jax: 0.10.0
libtpu: 0.0.40
codegen_flags: <defaults>
</compile_context>

<pallas_src>
import functools

import jax
import jax.numpy as jnp
from jax.experimental import pallas as pl
from jax.experimental.pallas import tpu as pltpu


def _vmem_budget_bytes():
    """Returns (physical per-core VMEM bytes, scoped vmem_limit to request)."""
    cap = None
    try:
        cap = getattr(pltpu.get_tpu_info(), "vmem_capacity_bytes", None)
    except Exception:
        cap = None
    if not cap:
        cap = 64 * 1024 * 1024          # conservative default: v7x per-core
    # Leave headroom for compiler-internal scratch: ~48 MiB on v7x (64 MiB
    # physical), ~96 MiB on v5e / v6e (128 MiB physical).
    return cap, min(cap * 3 // 4, 100 * 1024 * 1024)


def _choose_spatial_tile(hw, c, itemsize, max_block_bytes):
    """Pick a spatial tile for the fallback path: the largest lane-aligned
    (multiple of 128) divisor of `hw` whose (C, tile) block fits the byte
    budget; else fall back to the full HW (block dims equal to the full array
    dims are always a legal block shape)."""
    max_elems = max(1, min(hw, max_block_bytes // max(1, c * itemsize)))
    lane_aligned = [d for d in range(128, max_elems + 1, 128) if hw % d == 0]
    if lane_aligned:
        return max(lane_aligned)
    return hw


# --------------------------------------------------------------------------
# Fused single-pass kernel: pool + conv + sigmoid + gate on a resident slab.
# --------------------------------------------------------------------------
def _eca_fused_kernel(w_ref, x_ref, o_ref, pad_ref, *, inv_hw):
    # w_ref   : SMEM (3,) f32           Conv1d(1,1,3,bias=False) taps
    # x_ref   : VMEM (1, C, HW)         one full batch slab, input dtype
    # o_ref   : VMEM (1, C, HW)         gated output, input dtype
    # pad_ref : VMEM (C+2, 1) f32       zero-padded means (conv scratch)
    C = x_ref.shape[1]
    x = x_ref[0]                                          # (C, HW)
    # Global average pool on the (otherwise idle) MXU, f32 accumulation —
    # avoids an XLU cross-lane reduce and any full-tile f32 upcast.
    mean = jnp.dot(x, jnp.ones((x.shape[-1], 1), x.dtype),
                   preferred_element_type=jnp.float32) * inv_hw     # (C,1) f32
    # Rows 0 and C+1 stay zero and provide the conv's zero padding, so the
    # 3-tap cross-correlation over channels is three offset slices.
    pad_ref[...] = jnp.zeros_like(pad_ref)
    pad_ref[1:C + 1, :] = mean
    conv = (w_ref[0] * pad_ref[0:C, :]
            + w_ref[1] * pad_ref[1:C + 1, :]
            + w_ref[2] * pad_ref[2:C + 2, :])                       # (C,1) f32
    gate = jax.nn.sigmoid(conv).astype(x.dtype)   # tiny cast; the gating
    o_ref[0] = (x * gate).astype(o_ref.dtype)     # multiply stays in input dtype


# --------------------------------------------------------------------------
# Fallback pass 1: tiled spatial reduction -> per-channel sigmoid gate.
# --------------------------------------------------------------------------
def _eca_pool_scale_kernel(w_ref, x_ref, scale_ref, acc_ref, pad_ref, *, inv_hw):
    # w_ref     : SMEM (3,) f32          conv taps
    # x_ref     : VMEM (1, C, hw_tile)   one spatial tile of one batch element
    # scale_ref : VMEM (1, C, 1) f32     per-channel sigmoid gate (out)
    # acc_ref   : VMEM (C, 1) f32        sublane-ALIGNED running channel sums
    # pad_ref   : VMEM (C+2, 1) f32      zero-padded means (finalize only)
    C = x_ref.shape[1]
    h = pl.program_id(1)

    @pl.when(h == 0)
    def _init():
        acc_ref[...] = jnp.zeros_like(acc_ref)

    x = x_ref[0]                                          # (C, hw_tile)
    # MXU reduction (f32 accumulate) for ALL dtypes: on v6e/v7x an XLU lane
    # reduce of a multi-MiB tile can rival the per-tile HBM DMA; the MXU has
    # huge slack here.  The per-step accumulate is fully sublane-aligned.
    acc_ref[...] += jnp.dot(x, jnp.ones((x.shape[-1], 1), x.dtype),
                            preferred_element_type=jnp.float32)     # (C,1) f32

    @pl.when(h == pl.num_programs(1) - 1)
    def _finalize():
        # All misaligned (+/-1 channel shift) work happens only here, once per
        # batch element.  conv is linear, so the 1/HW mean factor folds in.
        pad_ref[...] = jnp.zeros_like(pad_ref)
        pad_ref[1:C + 1, :] = acc_ref[...] * inv_hw
        conv = (w_ref[0] * pad_ref[0:C, :]
                + w_ref[1] * pad_ref[1:C + 1, :]
                + w_ref[2] * pad_ref[2:C + 2, :])                   # (C,1) f32
        scale_ref[0] = jax.nn.sigmoid(conv)


# --------------------------------------------------------------------------
# Fallback pass 2: tiled, pipelined gating multiply (input dtype).
# --------------------------------------------------------------------------
def _eca_apply_kernel(scale_ref, x_ref, o_ref):
    # scale_ref : VMEM (1, C, 1) f32
    # x_ref     : VMEM (1, C, hw_tile)  input dtype
    # o_ref     : VMEM (1, C, hw_tile)  input dtype
    x = x_ref[...]
    gate = scale_ref[...].astype(x.dtype)         # tiny cast; multiply stays
    o_ref[...] = (x * gate).astype(o_ref.dtype)   # in the input dtype


def eca_layer_pallas(x, conv_weight, *, max_block_bytes=8 * 1024 * 1024,
                     force_two_pass=False):
    """x: (B, C, H, W); conv_weight: Conv1d(1,1,3,bias=False) weights of shape
    (3,), (1,3) or (1,1,3).  `force_two_pass` is a testing knob that disables
    the fused path."""
    B, C, H, W = x.shape
    HW = H * W
    x_flat = x.reshape(B, C, HW)
    w = jnp.asarray(conv_weight, jnp.float32).reshape(-1)  # (3,)

    itemsize = jnp.dtype(x.dtype).itemsize
    slab_bytes = C * HW * itemsize
    inv_hw = 1.0 / HW
    cap, vmem_limit = _vmem_budget_bytes()

    # Fused path needs ~4x slab (double-buffered in + out) plus in-kernel
    # intermediates; 6x keeps comfortable headroom on every generation
    # (slab <= ~8 MiB on v7x, <= ~16 MiB on v5e/v6e).
    fused = (not force_two_pass) and (6 * slab_bytes <= vmem_limit)

    if fused:
        out_flat = pl.pallas_call(
            functools.partial(_eca_fused_kernel, inv_hw=inv_hw),
            out_shape=jax.ShapeDtypeStruct((B, C, HW), x.dtype),
            grid_spec=pltpu.PrefetchScalarGridSpec(
                num_scalar_prefetch=0,
                grid=(B,),
                in_specs=[
                    pl.BlockSpec(memory_space=pltpu.MemorySpace.SMEM),  # taps
                    pl.BlockSpec((1, C, HW), lambda b: (b, 0, 0)),      # slab
                ],
                out_specs=pl.BlockSpec((1, C, HW), lambda b: (b, 0, 0)),
                scratch_shapes=[pltpu.VMEM((C + 2, 1), jnp.float32)],
            ),
            compiler_params=pltpu.CompilerParams(
                dimension_semantics=("parallel",),
                vmem_limit_bytes=vmem_limit,
            ),
        )(w, x_flat)
        return out_flat.reshape(B, C, H, W)

    # ------------------------- fallback: two passes -------------------------
    hw_tile = _choose_spatial_tile(HW, C, itemsize, max_block_bytes)
    n_hw = HW // hw_tile

    # Best effort if no lane-aligned tiling exists and the full-HW block is
    # large: raise the scoped limit toward the physical cap (pass 2 buffers
    # ~4x the block).  May still not fit on v7x for extreme shapes; see the
    # (B, HW, C) layout TODO at the top of the file.
    needed = 4 * C * hw_tile * itemsize + (2 << 20)
    vmem_limit_fb = max(vmem_limit, min(needed, cap - (4 << 20)))

    # ---- pass 1: fused global-avg-pool + channel conv + sigmoid -> gate ----
    scale = pl.pallas_call(
        functools.partial(_eca_pool_scale_kernel, inv_hw=inv_hw),
        out_shape=jax.ShapeDtypeStruct((B, C, 1), jnp.float32),
        grid_spec=pltpu.PrefetchScalarGridSpec(
            num_scalar_prefetch=0,
            grid=(B, n_hw),
            in_specs=[
                pl.BlockSpec(memory_space=pltpu.MemorySpace.SMEM),      # taps
                pl.BlockSpec((1, C, hw_tile), lambda b, h: (b, 0, h)),  # x tile
            ],
            out_specs=pl.BlockSpec((1, C, 1), lambda b, h: (b, 0, 0)),
            scratch_shapes=[pltpu.VMEM((C, 1), jnp.float32),
                            pltpu.VMEM((C + 2, 1), jnp.float32)],
        ),
        compiler_params=pltpu.CompilerParams(
            dimension_semantics=("parallel", "arbitrary"),
            vmem_limit_bytes=vmem_limit_fb,
        ),
    )(w, x_flat)

    # ---- pass 2: tiled, pipelined gating multiply (input dtype) ----
    out_flat = pl.pallas_call(
        _eca_apply_kernel,
        out_shape=jax.ShapeDtypeStruct((B, C, HW), x.dtype),
        grid_spec=pltpu.PrefetchScalarGridSpec(
            num_scalar_prefetch=0,
            grid=(B, n_hw),
            in_specs=[
                pl.BlockSpec((1, C, 1), lambda b, h: (b, 0, 0)),        # gate
                pl.BlockSpec((1, C, hw_tile), lambda b, h: (b, 0, h)),  # x tile
            ],
            out_specs=pl.BlockSpec((1, C, hw_tile), lambda b, h: (b, 0, h)),
        ),
        compiler_params=pltpu.CompilerParams(
            dimension_semantics=("parallel", "parallel"),
            vmem_limit_bytes=vmem_limit_fb,
        ),
    )(scale, x_flat)

    return out_flat.reshape(B, C, H, W)


def eca_reference(x, conv_weight):
    """Pure-JAX reference mirroring the PyTorch forward."""
    w = jnp.asarray(conv_weight, jnp.float32).reshape(-1)
    y = jnp.mean(x, axis=(2, 3))                       # (B, C)
    yp = jnp.pad(y, ((0, 0), (1, 1)))                  # zero pad channels
    conv = w[0] * yp[:, :-2] + w[1] * yp[:, 1:-1] + w[2] * yp[:, 2:]
    scale = jax.nn.sigmoid(conv)
    return x * scale[:, :, None, None]


if __name__ == "__main__":
    key = jax.random.PRNGKey(0)
    kx, kw = jax.random.split(key)

    B, C, H, W = 2, 4, 16, 16
    x = jax.random.normal(kx, (B, C, H, W), dtype=jnp.float32)
    # Conv1d(1, 1, kernel_size=3, bias=False) weight, (1,1,3) flattened -> (3,)
    conv_weight = jax.random.normal(kw, (3,), dtype=jnp.float32) * 0.5

    ref = eca_reference(x, conv_weight)

    # 1) f32, fused single-pass path (default).
    out = jax.block_until_ready(eca_layer_pallas(x, conv_weight))
    assert out.shape == x.shape
    assert jnp.allclose(out, ref, atol=1e-5, rtol=1e-5), "f32 fused mismatch"

    # 2) force the two-pass fallback with a multi-tile spatial reduction
    #    (hw_tile=128 -> 2 tiles/batch elem) to exercise the aligned
    #    accumulator / finalize path.
    out_tiled = jax.block_until_ready(
        eca_layer_pallas(x, conv_weight, force_two_pass=True,
                         max_block_bytes=2048))
    assert jnp.allclose(out_tiled, ref, atol=1e-5, rtol=1e-5), "tiled mismatch"

    # 3) bf16 fused path: gating multiply stays in bf16 (intentional, matches
    #    autocast behavior); pool / conv / sigmoid stay in f32.
    x_bf16 = x.astype(jnp.bfloat16)
    out_bf16 = jax.block_until_ready(eca_layer_pallas(x_bf16, conv_weight))
    ref_bf16 = eca_reference(x_bf16.astype(jnp.float32), conv_weight)
    assert jnp.allclose(out_bf16.astype(jnp.float32), ref_bf16,
                        atol=5e-2, rtol=5e-2), "bf16 mismatch vs reference"

    print("KERNEL_OK")
</pallas_src>

<mosaic_0001>
module attributes {stable_mosaic.version = 11 : i64} {
  func.func @_eca_fused_kernel(%arg0: i32, %arg1: memref<3xf32, #tpu.memory_space<smem>>, %arg2: memref<1x4x256xf32, #tpu.memory_space<vmem>>, %arg3: memref<1x4x256xf32, #tpu.memory_space<vmem>>, %arg4: memref<6x1xf32, #tpu.memory_space<vmem>>) attributes {dimension_semantics = [#tpu.dimension_semantics<parallel>], iteration_bounds = array<i64: 2>, scalar_prefetch = 0 : i64, scratch_operands = 1 : i64, tpu.core_type = #tpu.core_type<tc>, window_params = [{transform_indices = @transform_0, window_bounds = array<i64: 3>}, {transform_indices = @transform_1, window_bounds = array<i64: 1, 4, 256>}, {transform_indices = @transform_2, window_bounds = array<i64: 1, 4, 256>}]} {
    %c0 = arith.constant 0 : index
    %c0_0 = arith.constant 0 : index
    %c0_1 = arith.constant 0 : index
    %0 = vector.load %arg2[%c0, %c0_0, %c0_1] : memref<1x4x256xf32, #tpu.memory_space<vmem>>, vector<1x4x256xf32>
    %1 = vector.shape_cast %0 : vector<1x4x256xf32> to vector<4x256xf32>
    %cst = arith.constant 1.000000e+00 : f32
    %2 = vector.broadcast %cst : f32 to vector<256x1xf32>
    %cst_2 = arith.constant dense<0.000000e+00> : vector<4x1xf32>
    %3 = tpu.matmul %1, %2, %cst_2 {dimension_numbers = #tpu.dot_dimension_numbers<[1], [0], [0], [1], [0, 0, 1, 1], [], []>} : vector<4x256xf32>, vector<256x1xf32>, vector<4x1xf32> -> vector<4x1xf32>
    %cst_3 = arith.constant 3.906250e-03 : f32
    %4 = vector.broadcast %cst_3 : f32 to vector<4x1xf32>
    %5 = arith.mulf %3, %4 : vector<4x1xf32>
    %cst_4 = arith.constant 0.000000e+00 : f32
    %6 = vector.broadcast %cst_4 : f32 to vector<6x1xf32>
    %c0_5 = arith.constant 0 : index
    %c0_6 = arith.constant 0 : index
    %7 = vector.load %arg4[%c0_5, %c0_6] : memref<6x1xf32, #tpu.memory_space<vmem>>, vector<6x1xf32>
    tpu.vector_store %arg4[%c0_5, %c0_6], %6 {strides = array<i32>} : memref<6x1xf32, #tpu.memory_space<vmem>>, vector<6x1xf32>,
    %c1 = arith.constant 1 : index
    %c0_7 = arith.constant 0 : index
    %8 = vector.load %arg4[%c1, %c0_7] : memref<6x1xf32, #tpu.memory_space<vmem>>, vector<4x1xf32>
    tpu.vector_store %arg4[%c1, %c0_7], %5 {strides = array<i32>} : memref<6x1xf32, #tpu.memory_space<vmem>>, vector<4x1xf32>,
    %c0_8 = arith.constant 0 : index
    %9 = memref.load %arg1[%c0_8] : memref<3xf32, #tpu.memory_space<smem>>
    %c0_9 = arith.constant 0 : index
    %c0_10 = arith.constant 0 : index
    %10 = vector.load %arg4[%c0_9, %c0_10] : memref<6x1xf32, #tpu.memory_space<vmem>>, vector<4x1xf32>
    %11 = vector.broadcast %9 : f32 to vector<4x1xf32>
    %12 = arith.mulf %11, %10 : vector<4x1xf32>
    %c1_11 = arith.constant 1 : index
    %13 = memref.load %arg1[%c1_11] : memref<3xf32, #tpu.memory_space<smem>>
    %c1_12 = arith.constant 1 : index
    %c0_13 = arith.constant 0 : index
    %14 = vector.load %arg4[%c1_12, %c0_13] : memref<6x1xf32, #tpu.memory_space<vmem>>, vector<4x1xf32>
    %15 = vector.broadcast %13 : f32 to vector<4x1xf32>
    %16 = arith.mulf %15, %14 : vector<4x1xf32>
    %17 = arith.addf %12, %16 : vector<4x1xf32>
    %c2 = arith.constant 2 : index
    %18 = memref.load %arg1[%c2] : memref<3xf32, #tpu.memory_space<smem>>
    %c2_14 = arith.constant 2 : index
    %c0_15 = arith.constant 0 : index
    %19 = vector.load %arg4[%c2_14, %c0_15] : memref<6x1xf32, #tpu.memory_space<vmem>>, vector<4x1xf32>
    %20 = vector.broadcast %18 : f32 to vector<4x1xf32>
    %21 = arith.mulf %20, %19 : vector<4x1xf32>
    %22 = arith.addf %17, %21 : vector<4x1xf32>
    %23 = arith.negf %22 : vector<4x1xf32>
    %24 = math.exp %23 : vector<4x1xf32>
    %cst_16 = arith.constant 1.000000e+00 : f32
    %25 = vector.broadcast %cst_16 : f32 to vector<4x1xf32>
    %26 = arith.addf %25, %24 : vector<4x1xf32>
    %27 = arith.divf %25, %26 : vector<4x1xf32>
    %28 = vector.broadcast %27 : vector<4x1xf32> to vector<4x256xf32>
    %29 = arith.mulf %1, %28 : vector<4x256xf32>
    %c0_17 = arith.constant 0 : index
    %c0_18 = arith.constant 0 : index
    %c0_19 = arith.constant 0 : index
    %30 = vector.load %arg3[%c0_17, %c0_18, %c0_19] : memref<1x4x256xf32, #tpu.memory_space<vmem>>, vector<1x4x256xf32>
    %31 = vector.shape_cast %30 : vector<1x4x256xf32> to vector<4x256xf32>
    %32 = vector.shape_cast %29 : vector<4x256xf32> to vector<1x4x256xf32>
    tpu.vector_store %arg3[%c0_17, %c0_18, %c0_19], %32 {strides = array<i32>} : memref<1x4x256xf32, #tpu.memory_space<vmem>>, vector<1x4x256xf32>,
    return
  }
  func.func @transform_0(%arg0: i32) -> i32 {
    %c0_i32 = arith.constant 0 : i32
    %c0_i32_0 = arith.constant 0 : i32
    return %c0_i32 : i32
  }
  func.func @transform_1(%arg0: i32) -> (i32, i32, i32) {
    %c0_i32 = arith.constant 0 : i32
    %c0_i32_0 = arith.constant 0 : i32
    %c0_i32_1 = arith.constant 0 : i32
    return %arg0, %c0_i32, %c0_i32_0 : i32, i32, i32
  }
  func.func @transform_2(%arg0: i32) -> (i32, i32, i32) {
    %c0_i32 = arith.constant 0 : i32
    %c0_i32_0 = arith.constant 0 : i32
    %c0_i32_1 = arith.constant 0 : i32
    return %arg0, %c0_i32, %c0_i32_0 : i32, i32, i32
  }
}

</mosaic_0001>

<llo_original>
// kernel: tpu_custom_call.1
$region0: #{tpu_custom_call.1}
  #allocation0 [shape = 'u32[]', space=smem, size = 0x4, offset = 0x4, fixed_abs, tag = 'smem constant byte address 0x4 - core index']
  #allocation1 [shape = 'u32[144,128]{1,0:T(1,128)}', space=vmem, size = 0x12000, scoped, tag = 'internal scratch']
  #allocation2 [shape = 'f32[6,1]{1,0:T(8,128)}', space=vmem, size = 0x1000, scoped, tag = 'scratch operand']
  %s0 = inlined_call_operand.hbm [shape: f32[3], index: 0, kind: input, shape index: {}]
  %s1 = inlined_call_operand.hbm [shape: f32[2,4,256], index: 1, kind: input, shape index: {}]
  %s2 = inlined_call_operand.hbm [shape: f32[2,4,256], index: 2, kind: output, shape index: {}]
  %s3 = sld [smem:[#allocation0]]
  $region49: #{tpu_custom_call.1} parent=0
    _
  %s5 = ssub.s32 1, %s3
  %s6 = scalar_select 0, %s5, %s3
  $region1: #{tpu_custom_call.1} parent=0
    #allocation3 [shape = 'u8[512]{0}', space=smem, size = 0x200, scoped, tag = 'input window, operand 0, single buffered']
    #allocation4 [shape = 's32[2]{0}', space=sflag, size = 0x8, scoped, tag = 'scoped memory for tpu_custom_call.1']
    #allocation5 [shape = 's32[2]{0}', space=sflag, size = 0x8, scoped, tag = 'scoped memory for tpu_custom_call.1']
    #allocation6 [shape = 's32[2]{0}', space=sflag, size = 0x8, scoped, tag = 'scoped memory for tpu_custom_call.1']
    #allocation7 [shape = 'u8[8192]{0}', space=vmem, size = 0x2000, scoped, tag = 'input window, operand 1']
    #allocation8 [shape = 'u8[8192]{0}', space=vmem, size = 0x2000, scoped, tag = 'output window, operand 0']
    %7 = vsyncpa [#allocation6], 0
    %8 = vsyncpa [#allocation4], 0
    %s9 = scalar_lea.sflag [#allocation4], 1
    %10 = vsyncpa %s9, 0
    %11 = vsyncpa [#allocation5], 0
    %s12 = scalar_lea.sflag [#allocation5], 1
    %13 = vsyncpa %s12, 0
    loop: start=0, step=1, limit=4
    $region2: #{tpu_custom_call.1} parent=1 // loop_pre_header
      _
    $region3: #{tpu_custom_call.1} parent=1 // loop_header
      %s15 = sphi 0, %s19
      %p16 = scmp.ge.s32.totalorder %s15, 4
      %s23 = sphi 0, %s23
      %s25 = sphi 0, %s23
      %s26 = sphi 0, %s25
      %s40 = sphi 0, %s26
      %s46 = sphi 0, %s48
      %s49 = sphi 0, %s46
      %s50 = sphi 0, %s49
      %s66 = sphi 0, %s50
      %s72 = sphi 0, %s74
      %s75 = sphi 0, %s72
      %s76 = sphi 0, %s75
      %s92 = sphi 0, %s76
    $region4: #{tpu_custom_call.1} parent=1 // loop_header_branch
      %18 = sbr.rel (%p16) target = $region8
    $region5: #{tpu_custom_call.1} parent=1 // loop_body
      %s20 = ssub.s32 %s15, 1
      %s21 = ssub.s32 %s15, 2
      %s22 = sadd.s32 %s15, 1
      %s24 = sadd.s32 %s23, 1
      %p27 = scmp.eq.s32.totalorder %s15, 1
      %p28 = scmp.ne.s32.totalorder %s23, %s25
      %p29 = scmp.eq.s32.totalorder %s15, 0
      %p30 = por %p28, %p29
      %p31 = scmp.ne.s32.totalorder %s23, %s25
      %p32 = scmp.eq.s32.totalorder %s20, 1
      %p33 = por %p31, %p32
      %p34 = scmp.ne.s32.totalorder %s25, %s26
      %p35 = scmp.eq.s32.totalorder %s20, 0
      %p36 = por %p34, %p35
      %p37 = scmp.ne.s32.totalorder %s25, %s26
      %p38 = scmp.eq.s32.totalorder %s21, 1
      %p39 = por %p37, %p38
      %p41 = scmp.ne.s32.totalorder %s26, %s40
      %p42 = scmp.eq.s32.totalorder %s21, 0
      %p43 = por %p41, %p42
      %s44 = ssub.s32 %s15, %s22
      %p45 = scmp.eq.s32.totalorder %s44, 0
      %s47 = sadd.s32 %s46, 1
      %s48 = scalar_select %p45, %s46, %s47
      %p51 = pneg %p45
      %p52 = scmp.eq.s32.totalorder %s15, 1
      %p53 = por %p51, %p52
      %p54 = scmp.ne.s32.totalorder %s46, %s49
      %p55 = scmp.eq.s32.totalorder %s15, 0
      %p56 = por %p54, %p55
      %p57 = scmp.ne.s32.totalorder %s46, %s49
      %p58 = scmp.eq.s32.totalorder %s20, 1
      %p59 = por %p57, %p58
      %p60 = scmp.ne.s32.totalorder %s49, %s50
      %p61 = scmp.eq.s32.totalorder %s20, 0
      %p62 = por %p60, %p61
      %p63 = scmp.ne.s32.totalorder %s49, %s50
      %p64 = scmp.eq.s32.totalorder %s21, 1
      %p65 = por %p63, %p64
      %p67 = scmp.ne.s32.totalorder %s50, %s66
      %p68 = scmp.eq.s32.totalorder %s21, 0
      %p69 = por %p67, %p68
      %s70 = ssub.s32 %s15, %s22
      %p71 = scmp.eq.s32.totalorder %s70, 0
      %s73 = sadd.s32 %s72, 1
      %s74 = scalar_select %p71, %s72, %s73
      %p77 = pneg %p71
      %p78 = scmp.eq.s32.totalorder %s15, 1
      %p79 = por %p77, %p78
      %p80 = scmp.ne.s32.totalorder %s72, %s75
      %p81 = scmp.eq.s32.totalorder %s15, 0
      %p82 = por %p80, %p81
      %p83 = scmp.ne.s32.totalorder %s72, %s75
      %p84 = scmp.eq.s32.totalorder %s20, 1
      %p85 = por %p83, %p84
      %p86 = scmp.ne.s32.totalorder %s75, %s76
      %p87 = scmp.eq.s32.totalorder %s20, 0
      %p88 = por %p86, %p87
      %p89 = scmp.ne.s32.totalorder %s75, %s76
      %p90 = scmp.eq.s32.totalorder %s21, 1
      %p91 = por %p89, %p90
      %p93 = scmp.ne.s32.totalorder %s76, %s92
      %p94 = scmp.eq.s32.totalorder %s21, 0
      %p95 = por %p93, %p94
      %p96 = scmp.le.s32.totalorder 1, %s15
      %p97 = scmp.lt.s32.totalorder %s15, 3
      %p98 = pnand %p96, %p97
      %p99 = pneg %p98
      // Predicated region
      $region9: #{tpu_custom_call.1} parent=5 // pred_check
        _
      $region10: #{tpu_custom_call.1} parent=5 // pred_check_branch
        %101 = sbr.rel (%p98) target = $region12
      $region11: #{tpu_custom_call.1} parent=5 // pred_region
        %s102 = ssub.s32 %s15, 1
        // Predicated region
        $region13: #{tpu_custom_call.1} parent=11 // pred_check
          %p103 = pneg %p36
        $region14: #{tpu_custom_call.1} parent=11 // pred_check_branch
          %105 = sbr.rel (%p103) target = $region16
        $region15: #{tpu_custom_call.1} parent=11 // pred_region
          %s107 = ssub.s32 16, 16
          %108 = vsyncadd [#allocation6], %s107
          %111 = dma.hbm_to_smem %s0, 16, [#allocation3], [#allocation6]
        $region16: #{tpu_custom_call.1} parent=11 // pred_fallthru
          _
      $region12: #{tpu_custom_call.1} parent=5 // pred_fallthru
        _
      %p112 = scmp.lt.s32.totalorder %s15, 2
      // Predicated region
      $region17: #{tpu_custom_call.1} parent=5 // pred_check
        %p113 = pneg %p112
      $region18: #{tpu_custom_call.1} parent=5 // pred_check_branch
        %115 = sbr.rel (%p113) target = $region20
      $region19: #{tpu_custom_call.1} parent=5 // pred_region
        // Predicated region
        $region21: #{tpu_custom_call.1} parent=19 // pred_check
          %p116 = pneg %p56
        $region22: #{tpu_custom_call.1} parent=19 // pred_check_branch
          %118 = sbr.rel (%p116) target = $region24
        $region23: #{tpu_custom_call.1} parent=19 // pred_region
          %s119 = sand.u32 %s46, 1
          %s120 = scalar_lea.sflag [#allocation4], %s119
          %s121 = sand.u32 %s46, 1
          %s122 = smul.addr %s121, 8
          %s123 = scalar_lea.vmem [#allocation7], %s122
          %s125 = ssub.s32 128, 128
          %126 = vsyncadd %s120, %s125
          %s127 = smul.addr %s15, 2
          %s128 = smul.addr %s127, 64
          %s129 = scalar_lea.hbm %s1, %s128
          %s131 = sshll.u32 %s123, 4
          %s132 = int_to_ptr.vmem [resolvable:$true] %s131
          %134 = dma.hbm_to_vmem [thread:$0]  %s129, 128, %s132, %s120
        $region24: #{tpu_custom_call.1} parent=19 // pred_fallthru
          _
      $region20: #{tpu_custom_call.1} parent=5 // pred_fallthru
        _
      %p135 = scmp.le.s32.totalorder 1, %s15
      %p136 = scmp.lt.s32.totalorder %s15, 3
      %p137 = pnand %p135, %p136
      %p138 = pneg %p137
      // Predicated region
      $region25: #{tpu_custom_call.1} parent=5 // pred_check
        _
      $region26: #{tpu_custom_call.1} parent=5 // pred_check_branch
        %140 = sbr.rel (%p137) target = $region28
      $region27: #{tpu_custom_call.1} parent=5 // pred_region
        %s141 = ssub.s32 %s15, 1
        // Predicated region
        $region29: #{tpu_custom_call.1} parent=27 // pred_check
          %p142 = pneg %p36
        $region30: #{tpu_custom_call.1} parent=27 // pred_check_branch
          %144 = sbr.rel (%p142) target = $region32
        $region31: #{tpu_custom_call.1} parent=27 // pred_region
          %145 = dma.done [#allocation6], 16
        $region32: #{tpu_custom_call.1} parent=27 // pred_fallthru
          _
        %s146 = sand.u32 %s49, 1
        %s147 = scalar_lea.sflag [#allocation4], %s146
        %s148 = sand.u32 %s49, 1
        %s149 = smul.addr %s148, 8
        %s150 = scalar_lea.vmem [#allocation7], %s149
        // Predicated region
        $region33: #{tpu_custom_call.1} parent=27 // pred_check
          %p151 = pneg %p62
        $region34: #{tpu_custom_call.1} parent=27 // pred_check_branch
          %153 = sbr.rel (%p151) target = $region36
        $region35: #{tpu_custom_call.1} parent=27 // pred_region
          %154 = dma.done %s147, 128
        $region36: #{tpu_custom_call.1} parent=27 // pred_fallthru
          _
        %155 = sfence
        %p156 = pneg %p36
        %p157 = pneg %p33
        %s158 = sand.u32 %s49, 1
        %s159 = scalar_lea.sflag [#allocation4], %s158
        %s160 = sand.u32 %s49, 1
        %s161 = smul.addr %s160, 8
        %s162 = scalar_lea.vmem [#allocation7], %s161
        %p163 = pneg %p62
        %p164 = pneg %p59
        %p165 = pneg %p88
        %p166 = pneg %p85
        %s167 = sand.u32 %s75, 1
        %s168 = scalar_lea.sflag [#allocation5], %s167
        %s169 = sand.u32 %s75, 1
        %s170 = smul.addr %s169, 8
        %s171 = scalar_lea.vmem [#allocation8], %s170
        %v172 = vld [vmem:[%s150] sm:$0xff]
        %v174 = vcombine.high %v172, %v172
        %176 = vmatprep.subr.mxu0 0.0
        %177 = vmatpush1.msra.mxu0 1.0
        %178 = vmatprep.subr.mxu0 0.0
        %179 = vmatpush1.msra.mxu0 1.0
        %180 = vmatprep.subr.mxu0 0.0
        %181 = vmatpush1.msra.mxu0 1.0
        %182 = vmatprep.subr.mxu0 0.0
        %183 = vmatpush1.msra.mxu0 1.0
        %184 = vmatprep.subr.mxu0 0.0
        %185 = vmatpush1.msra.mxu0 1.0
        %186 = vmatprep.subr.mxu0 0.0
        %187 = vmatpush1.msra.mxu0 1.0
        %188 = vmatprep.subr.mxu0 0.0
        %189 = vmatpush1.msra.mxu0 1.0
        %190 = vmatprep.subr.mxu0 0.0
        %191 = vmatpush1.msra.mxu0 1.0
        %192 = vmatprep.subr.mxu0 0.0
        %193 = vmatpush1.msra.mxu0 1.0
        %194 = vmatprep.subr.mxu0 0.0
        %195 = vmatpush1.msra.mxu0 1.0
        %196 = vmatprep.subr.mxu0 0.0
        %197 = vmatpush1.msra.mxu0 1.0
        %198 = vmatprep.subr.mxu0 0.0
        %199 = vmatpush1.msra.mxu0 1.0
        %200 = vmatprep.subr.mxu0 0.0
        %201 = vmatpush1.msra.mxu0 1.0
        %202 = vmatprep.subr.mxu0 0.0
        %203 = vmatpush1.msra.mxu0 1.0
        %204 = vmatprep.subr.mxu0 0.0
        %205 = vmatpush1.msra.mxu0 1.0
        %206 = vmatprep.subr.mxu0 0.0
        %207 = vmatpush1.msra.mxu0 1.0
        %208 = vmatprep.subr.mxu0 0.0
        %209 = vmatpush1.msra.mxu0 1.0
        %210 = vmatprep.subr.mxu0 0.0
        %211 = vmatpush1.msra.mxu0 1.0
        %212 = vmatprep.subr.mxu0 0.0
        %213 = vmatpush1.msra.mxu0 1.0
        %214 = vmatprep.subr.mxu0 0.0
        %215 = vmatpush1.msra.mxu0 1.0
        %216 = vmatprep.subr.mxu0 0.0
        %217 = vmatpush1.msra.mxu0 1.0
        %218 = vmatprep.subr.mxu0 0.0
        %219 = vmatpush1.msra.mxu0 1.0
        %220 = vmatprep.subr.mxu0 0.0
        %221 = vmatpush1.msra.mxu0 1.0
        %222 = vmatprep.subr.mxu0 0.0
        %223 = vmatpush1.msra.mxu0 1.0
        %224 = vmatprep.subr.mxu0 0.0
        %225 = vmatpush1.msra.mxu0 1.0
        %226 = vmatprep.subr.mxu0 0.0
        %227 = vmatpush1.msra.mxu0 1.0
        %228 = vmatprep.subr.mxu0 0.0
        %229 = vmatpush1.msra.mxu0 1.0
        %230 = vmatprep.subr.mxu0 0.0
        %231 = vmatpush1.msra.mxu0 1.0
        %232 = vmatprep.subr.mxu0 0.0
        %233 = vmatpush1.msra.mxu0 1.0
        %234 = vmatprep.subr.mxu0 0.0
        %235 = vmatpush1.msra.mxu0 1.0
        %236 = vmatprep.subr.mxu0 0.0
        %237 = vmatpush1.msra.mxu0 1.0
        %238 = vmatprep.subr.mxu0 0.0
        %239 = vmatpush1.msra.mxu0 1.0
        %240 = vmatprep.mubr.f32.mxu0 %v174
        %241 = vmatmul.mubr.f32.gmra.mrb[0].mxu0 %v172
        %v242 = vpop.f32.mrb[0].mxu0
        %v243 = vadd.f32 0.0, %v242
        %v244 = vpop.f32.mrb[0].mxu0
        %245 = vdwg.mxu0
        %v246 = vmul.f32 %v243, 0.00390625
        %vm247 = vcmask 5120
        %248 = vst.msk [vmem:[#allocation2] sm:$0x3f] %vm247, 0.0
        %vm249 = vcmask 3072
        %250 = vst.msk [vmem:[#allocation2 + $0x1] sm:$0xf] %vm249, %v246
        %s251 = sld [smem:[#allocation3]]
        %v252 = vld [vmem:[#allocation2] sm:$0xf]
        %v253 = vstv %s251
        %v254 = vmul.f32 %v253, %v252
        %s255 = sld [smem:[#allocation3 + $0x1]]
        %v256 = vld [vmem:[#allocation2 + $0x1] sm:$0xf]
        %v257 = vstv %s255
        %v258 = vmul.f32 %v257, %v256
        %v259 = vadd.f32 %v254, %v258
        %s260 = sld [smem:[#allocation3 + $0x2]]
        %v261 = vld [vmem:[#allocation2 + $0x2] sm:$0xf]
        %v262 = vstv %s260
        %v263 = vmul.f32 %v262, %v261
        %v264 = vadd.f32 %v259, %v263
        %v265 = vxor.u32 %v264, 2147483648
        %v266 = vmul.f32 %v265, 1.442695
        %v267 = vpow.pop %v266
        %v268 = vadd.f32 %v267, 1.0
        %v269 = vrcp.pop %v268
        %v270 = vmul.f32 1.0, %v269
        %272 = vset.pattern.permute.xlu0 0
        %273 = vperm.xlu0 %272, %v270
        %v274 = vpop.permute.xlu0 %273
        %v276 = vunpack.c.l.s4 839922192
        %v277 = vunpack.c.0.s8 %v276
        %v278 = vlaneseq
        %v279 = vshrl.u32 %v278, 7
        %v280 = vsub.s32 %v277, %v279
        %v281 = vrot.slane %v274, %v280
        %v283 = vmul.f32 %v172, %v281
        %284 = vst [vmem:[%s171] sm:$0xff] %v283
        %s285 = sand.u32 %s75, 1
        %s286 = scalar_lea.sflag [#allocation5], %s285
        %s287 = sand.u32 %s75, 1
        %s288 = smul.addr %s287, 8
        %s289 = scalar_lea.vmem [#allocation8], %s288
        // Predicated region
        $region37: #{tpu_custom_call.1} parent=27 // pred_check
          %p290 = pneg %p85
        $region38: #{tpu_custom_call.1} parent=27 // pred_check_branch
          %292 = sbr.rel (%p290) target = $region40
        $region39: #{tpu_custom_call.1} parent=27 // pred_region
          %s294 = ssub.s32 128, 128
          %295 = vsyncadd %s286, %s294
          %s296 = smul.addr %s20, 2
          %s297 = smul.addr %s296, 64
          %s298 = scalar_lea.hbm %s2, %s297
          %s300 = sshll.u32 %s289, 4
          %s301 = int_to_ptr.vmem [resolvable:$true] %s300
          %303 = dma.vmem_to_hbm [thread:$0]  %s301, 128, %s298, %s286
        $region40: #{tpu_custom_call.1} parent=27 // pred_fallthru
          _
      $region28: #{tpu_custom_call.1} parent=5 // pred_fallthru
        _
      %p304 = scmp.le.s32.totalorder 2, %s15
      // Predicated region
      $region41: #{tpu_custom_call.1} parent=5 // pred_check
        %p305 = pneg %p304
      $region42: #{tpu_custom_call.1} parent=5 // pred_check_branch
        %307 = sbr.rel (%p305) target = $region44
      $region43: #{tpu_custom_call.1} parent=5 // pred_region
        %s308 = ssub.s32 %s15, 2
        // Predicated region
        $region45: #{tpu_custom_call.1} parent=43 // pred_check
          %p309 = pneg %p91
        $region46: #{tpu_custom_call.1} parent=43 // pred_check_branch
          %311 = sbr.rel (%p309) target = $region48
        $region47: #{tpu_custom_call.1} parent=43 // pred_region
          %s312 = sand.u32 %s76, 1
          %s313 = scalar_lea.sflag [#allocation5], %s312
          %s314 = sand.u32 %s76, 1
          %s315 = smul.addr %s314, 8
          %s316 = scalar_lea.vmem [#allocation8], %s315
          %317 = dma.done %s313, 128
        $region48: #{tpu_custom_call.1} parent=43 // pred_fallthru
          _
      $region44: #{tpu_custom_call.1} parent=5 // pred_fallthru
        _
    $region6: #{tpu_custom_call.1} parent=1 // loop_footer
      %s19 = sadd.s32 1, %s15
    $region7: #{tpu_custom_call.1} parent=1 // loop_footer_branch
      %14 = sbr.rel target = $region3
    $region8: #{tpu_custom_call.1} parent=1 // loop_exit
      _
    %318 = vsyncpa [#allocation4], 1
    %s319 = scalar_lea.sflag [#allocation4], 1
    %320 = vsyncpa %s319, 1
    %321 = vsyncpa [#allocation5], 1
    %s322 = scalar_lea.sflag [#allocation5], 1
    %323 = vsyncpa %s322, 1
    %324 = vsyncpa [#allocation6], 1
    %s325 = scalar_lea.sflag [#allocation6], 1
    %326 = vsyncpa %s325, 1

</llo_original>
